<compile_context>
chip_gen: v7x
topology: tpu7x:2x2x1
jax: 0.10.0
libtpu: 0.0.40
codegen_flags: <defaults>
</compile_context>

<pallas_src>
import jax
import jax.numpy as jnp
from jax.experimental import pallas as pl
from jax.experimental.pallas import tpu as pltpu


LANE = 128      # TPU lane width (last-dim tiling unit)
SUBLANE = 8     # TPU sublane width (second-to-last-dim tiling unit)


def _round_up(x, m):
    return (x + m - 1) // m * m


def _pad2(a, rows, cols):
    r, c = a.shape
    if r == rows and c == cols:
        return a
    return jnp.pad(a, ((0, rows - r), (0, cols - c)))


def _choose_tm(batch, tile_m):
    """Batch tile: multiple of 8, <= tile_m, aiming for >= 4 grid steps."""
    b8 = _round_up(max(batch, 1), SUBLANE)
    tm = _round_up(pl.cdiv(b8, 4), SUBLANE)   # target ~4 steps
    tm = max(SUBLANE, min(tm, tile_m, b8))
    return tm


def _autoencoder_kernel(x_ref,
                        ew1_ref, eb1_ref, ew2_ref, eb2_ref,
                        dw1_ref, db1_ref, dw2_ref, db2_ref,
                        out_ref):
    """Fused 2-layer encoder + 2-layer decoder MLP on one batch tile.

    encoder:  h = relu(x @ EW1 + eb1);  z = h @ EW2 + eb2
    decoder:  h = relu(relu(z) @ DW1 + db1);  y = h @ DW2 + db2
    (dropout == identity in eval mode)
    """
    cdt = ew1_ref.dtype                      # f32 (default) or bf16; casts are
    x = x_ref[...].astype(cdt)               # no-ops in the f32 path

    # ----- encoder -----
    h = jnp.dot(x, ew1_ref[...], preferred_element_type=jnp.float32)
    h = jnp.maximum(h + eb1_ref[...], 0.0)   # relu + (dropout == id)

    z = jnp.dot(h.astype(cdt), ew2_ref[...], preferred_element_type=jnp.float32)
    z = z + eb2_ref[...]

    # ----- decoder (return_embeddings == False path) -----
    z = jnp.maximum(z, 0.0)                  # relu + (dropout == id)

    h = jnp.dot(z.astype(cdt), dw1_ref[...], preferred_element_type=jnp.float32)
    h = jnp.maximum(h + db1_ref[...], 0.0)   # relu + (dropout == id)

    y = jnp.dot(h.astype(cdt), dw2_ref[...], preferred_element_type=jnp.float32)
    out_ref[...] = (y + db2_ref[...]).astype(out_ref.dtype)


def skeleton_autoencoder_forward(skel, params, *, tile_m=2048, use_bf16=None):
    """skel: (B, J, C) float32 skeleton data; params: dict of weights/biases.

    Returns the reconstructed skeleton with the same shape as `skel`.
    """
    # TODO(synk): external `skel` pre/post transform module treated as identity.
    B = skel.shape[0]
    skel_size = skel.shape
    x = skel.reshape(B, -1)                  # view(skel.size(0), -1)
    f_in = x.shape[1]

    ew1, eb1 = params["enc_fc1_w"], params["enc_fc1_b"]
    ew2, eb2 = params["enc_fc2_w"], params["enc_fc2_b"]
    dw1, db1 = params["dec_fc1_w"], params["dec_fc1_b"]
    dw2, db2 = params["dec_fc2_w"], params["dec_fc2_b"]

    hidden = ew1.shape[1]
    f_emb = ew2.shape[1]

    # Only the VMEM-resident / VMEM-only dims get lane padding; the HBM-heavy
    # x / out tensors keep their true width f_in.
    hid_p = _round_up(hidden, LANE)
    emb_p = _round_up(f_emb, LANE)

    # bf16 only pays off once the GEMMs are MXU-bound (large hidden widths).
    if use_bf16 is None:
        use_bf16 = max(hidden, f_emb, f_in) >= 512
    wdt = jnp.bfloat16 if use_bf16 else jnp.float32

    # ---- batch tiling (>= ~4 grid steps when batch allows -> DMA pipeline
    # overlap + v7x megacore sharding of the "parallel" axis) ----
    tm = _choose_tm(B, tile_m)
    b_p = _round_up(B, tm)
    grid = (b_p // tm,)

    x_p = jnp.pad(x, ((0, b_p - B), (0, 0))) if b_p != B else x

    # Zero-padded weights/biases (hidden/embedding dims only): padded lanes
    # stay exactly 0 through every layer (0-bias + relu(0) = 0), so they never
    # contaminate the real lanes.
    ew1_p = _pad2(ew1, f_in, hid_p).astype(wdt)
    eb1_p = _pad2(eb1, 1, hid_p)
    ew2_p = _pad2(ew2, hid_p, emb_p).astype(wdt)
    eb2_p = _pad2(eb2, 1, emb_p)
    dw1_p = _pad2(dw1, emb_p, hid_p).astype(wdt)
    db1_p = _pad2(db1, 1, hid_p)
    dw2_p = _pad2(dw2, hid_p, f_in).astype(wdt)
    db2_p = _pad2(db2, 1, f_in)

    # x/out blocks move with the grid; weight/bias blocks are constant
    # (index_map always (0, 0)) so they stay resident in VMEM across steps.
    moving = lambda shape: pl.BlockSpec(shape, lambda i: (i, 0))
    resident = lambda shape: pl.BlockSpec(shape, lambda i: (0, 0))

    weight_bytes = sum(int(a.size) * a.dtype.itemsize
                       for a in (ew1_p, eb1_p, ew2_p, eb2_p,
                                 dw1_p, db1_p, dw2_p, db2_p))
    flops = 2 * b_p * (f_in * hid_p + hid_p * emb_p
                       + emb_p * hid_p + hid_p * f_in)
    bytes_accessed = int(x_p.size) * 4 + b_p * f_in * 4 + weight_bytes

    # VMEM budget: double-buffered x/out tiles + weights + ~3 f32 intermediates.
    vmem_est = (4 * tm * f_in * 4
                + 3 * tm * max(hid_p, emb_p, f_in) * 4
                + weight_bytes)
    vmem_limit = int(min(max(2 * vmem_est, 16 << 20), 32 << 20))

    out = pl.pallas_call(
        _autoencoder_kernel,
        out_shape=jax.ShapeDtypeStruct((b_p, f_in), jnp.float32),
        grid=grid,
        in_specs=[
            moving((tm, f_in)),              # x tile (true width)
            resident((f_in, hid_p)),         # enc_fc1 weight (in, out)
            resident((1, hid_p)),            # enc_fc1 bias
            resident((hid_p, emb_p)),        # enc_fc2 weight
            resident((1, emb_p)),            # enc_fc2 bias
            resident((emb_p, hid_p)),        # dec_fc1 weight
            resident((1, hid_p)),            # dec_fc1 bias
            resident((hid_p, f_in)),         # dec_fc2 weight
            resident((1, f_in)),             # dec_fc2 bias
        ],
        out_specs=moving((tm, f_in)),        # true-width output tile
        compiler_params=pltpu.CompilerParams(
            dimension_semantics=("parallel",),   # v7x: shard batch over 2 TCs
            vmem_limit_bytes=vmem_limit),
        cost_estimate=pl.CostEstimate(
            flops=flops, transcendentals=0, bytes_accessed=bytes_accessed),
    )(x_p, ew1_p, eb1_p, ew2_p, eb2_p, dw1_p, db1_p, dw2_p, db2_p)

    out = out[:B] if b_p != B else out       # drop padded batch rows only
    return out.reshape(skel_size)


def init_params(key, f_in, hidden_units, f_embedding):
    """Deterministic synthetic parameters (shapes match nn.Linear layers)."""
    ks = jax.random.split(key, 8)

    def lin(kw, kb, fan_in, fan_out):
        # weight stored as (in, out) == PyTorch weight.T
        w = jax.random.normal(kw, (fan_in, fan_out), jnp.float32) * 0.05
        b = jax.random.normal(kb, (1, fan_out), jnp.float32) * 0.01
        return w, b

    p = {}
    p["enc_fc1_w"], p["enc_fc1_b"] = lin(ks[0], ks[1], f_in, hidden_units)
    p["enc_fc2_w"], p["enc_fc2_b"] = lin(ks[2], ks[3], hidden_units, f_embedding)
    p["dec_fc1_w"], p["dec_fc1_b"] = lin(ks[4], ks[5], f_embedding, hidden_units)
    p["dec_fc2_w"], p["dec_fc2_b"] = lin(ks[6], ks[7], hidden_units, f_in)
    return p


def _reference(x, params):
    h = jnp.maximum(x @ params["enc_fc1_w"] + params["enc_fc1_b"], 0.0)
    z = h @ params["enc_fc2_w"] + params["enc_fc2_b"]
    z = jnp.maximum(z, 0.0)
    h = jnp.maximum(z @ params["dec_fc1_w"] + params["dec_fc1_b"], 0.0)
    return h @ params["dec_fc2_w"] + params["dec_fc2_b"]


if __name__ == "__main__":
    key = jax.random.PRNGKey(0)
    k_in, k_par, k_big = jax.random.split(key, 3)

    # Small shapes: batch=2, 8 joints x 3 coords -> f_in = 24
    B, J, C = 2, 8, 3
    f_in = J * C
    hidden_units = 32
    f_embedding = 8

    skel = jax.random.normal(k_in, (B, J, C), jnp.float32)
    params = init_params(k_par, f_in, hidden_units, f_embedding)

    # --- small-batch run (single grid step, f32), exact check vs plain JAX
    out = skeleton_autoencoder_forward(skel, params)
    out = jax.block_until_ready(out)
    y_ref = _reference(skel.reshape(B, -1), params).reshape(B, J, C)
    assert out.shape == skel.shape
    assert jnp.allclose(out, y_ref, atol=1e-5, rtol=1e-5)

    # --- larger batch: exercises batch tiling (grid of 4 "parallel" steps,
    # auto double-buffered x/out DMAs); f32 path so the check stays tight.
    B2 = 1024
    skel2 = jax.random.normal(k_big, (B2, J, C), jnp.float32)
    out2 = skeleton_autoencoder_forward(skel2, params)
    out2 = jax.block_until_ready(out2)
    y_ref2 = _reference(skel2.reshape(B2, -1), params).reshape(B2, J, C)
    assert out2.shape == skel2.shape
    assert bool(jnp.all(jnp.isfinite(out2)))
    assert jnp.allclose(out2, y_ref2, atol=1e-4, rtol=1e-4)

    print("KERNEL_OK")
</pallas_src>

<mosaic_0001>
module attributes {stable_mosaic.version = 11 : i64} {
  func.func @_autoencoder_kernel(%arg0: i32, %arg1: memref<8x24xf32, #tpu.memory_space<vmem>>, %arg2: memref<24x128xf32, #tpu.memory_space<vmem>>, %arg3: memref<1x128xf32, #tpu.memory_space<vmem>>, %arg4: memref<128x128xf32, #tpu.memory_space<vmem>>, %arg5: memref<1x128xf32, #tpu.memory_space<vmem>>, %arg6: memref<128x128xf32, #tpu.memory_space<vmem>>, %arg7: memref<1x128xf32, #tpu.memory_space<vmem>>, %arg8: memref<128x24xf32, #tpu.memory_space<vmem>>, %arg9: memref<1x24xf32, #tpu.memory_space<vmem>>, %arg10: memref<8x24xf32, #tpu.memory_space<vmem>>) attributes {dimension_semantics = [#tpu.dimension_semantics<parallel>], iteration_bounds = array<i64: 1>, scalar_prefetch = 0 : i64, scratch_operands = 0 : i64, tpu.core_type = #tpu.core_type<tc>, window_params = [{transform_indices = @transform_0, window_bounds = array<i64: 8, 24>}, {pipeline_mode = #tpu.pipeline_mode<synchronous>, transform_indices = @transform_1, window_bounds = array<i64: 24, 128>}, {pipeline_mode = #tpu.pipeline_mode<synchronous>, transform_indices = @transform_2, window_bounds = array<i64: 1, 128>}, {pipeline_mode = #tpu.pipeline_mode<synchronous>, transform_indices = @transform_3, window_bounds = array<i64: 128, 128>}, {pipeline_mode = #tpu.pipeline_mode<synchronous>, transform_indices = @transform_4, window_bounds = array<i64: 1, 128>}, {pipeline_mode = #tpu.pipeline_mode<synchronous>, transform_indices = @transform_5, window_bounds = array<i64: 128, 128>}, {pipeline_mode = #tpu.pipeline_mode<synchronous>, transform_indices = @transform_6, window_bounds = array<i64: 1, 128>}, {pipeline_mode = #tpu.pipeline_mode<synchronous>, transform_indices = @transform_7, window_bounds = array<i64: 128, 24>}, {pipeline_mode = #tpu.pipeline_mode<synchronous>, transform_indices = @transform_8, window_bounds = array<i64: 1, 24>}, {transform_indices = @transform_9, window_bounds = array<i64: 8, 24>}]} {
    %c0 = arith.constant 0 : index
    %c0_0 = arith.constant 0 : index
    %0 = vector.load %arg1[%c0, %c0_0] : memref<8x24xf32, #tpu.memory_space<vmem>>, vector<8x24xf32>
    %c0_1 = arith.constant 0 : index
    %c0_2 = arith.constant 0 : index
    %1 = vector.load %arg2[%c0_1, %c0_2] : memref<24x128xf32, #tpu.memory_space<vmem>>, vector<24x128xf32>
    %cst = arith.constant dense<0.000000e+00> : vector<8x128xf32>
    %2 = tpu.matmul %0, %1, %cst {dimension_numbers = #tpu.dot_dimension_numbers<[1], [0], [0], [1], [0, 0, 1, 1], [], []>} : vector<8x24xf32>, vector<24x128xf32>, vector<8x128xf32> -> vector<8x128xf32>
    %c0_3 = arith.constant 0 : index
    %c0_4 = arith.constant 0 : index
    %3 = vector.load %arg3[%c0_3, %c0_4] : memref<1x128xf32, #tpu.memory_space<vmem>>, vector<1x128xf32>
    %4 = vector.broadcast %3 : vector<1x128xf32> to vector<8x128xf32>
    %5 = arith.addf %2, %4 : vector<8x128xf32>
    %cst_5 = arith.constant 0.000000e+00 : f32
    %6 = vector.broadcast %cst_5 : f32 to vector<8x128xf32>
    %7 = arith.maximumf %5, %6 : vector<8x128xf32>
    %c0_6 = arith.constant 0 : index
    %c0_7 = arith.constant 0 : index
    %8 = vector.load %arg4[%c0_6, %c0_7] : memref<128x128xf32, #tpu.memory_space<vmem>>, vector<128x128xf32>
    %cst_8 = arith.constant dense<0.000000e+00> : vector<8x128xf32>
    %9 = tpu.matmul %7, %8, %cst_8 {dimension_numbers = #tpu.dot_dimension_numbers<[1], [0], [0], [1], [0, 0, 1, 1], [], []>} : vector<8x128xf32>, vector<128x128xf32>, vector<8x128xf32> -> vector<8x128xf32>
    %c0_9 = arith.constant 0 : index
    %c0_10 = arith.constant 0 : index
    %10 = vector.load %arg5[%c0_9, %c0_10] : memref<1x128xf32, #tpu.memory_space<vmem>>, vector<1x128xf32>
    %11 = vector.broadcast %10 : vector<1x128xf32> to vector<8x128xf32>
    %12 = arith.addf %9, %11 : vector<8x128xf32>
    %cst_11 = arith.constant 0.000000e+00 : f32
    %13 = vector.broadcast %cst_11 : f32 to vector<8x128xf32>
    %14 = arith.maximumf %12, %13 : vector<8x128xf32>
    %c0_12 = arith.constant 0 : index
    %c0_13 = arith.constant 0 : index
    %15 = vector.load %arg6[%c0_12, %c0_13] : memref<128x128xf32, #tpu.memory_space<vmem>>, vector<128x128xf32>
    %cst_14 = arith.constant dense<0.000000e+00> : vector<8x128xf32>
    %16 = tpu.matmul %14, %15, %cst_14 {dimension_numbers = #tpu.dot_dimension_numbers<[1], [0], [0], [1], [0, 0, 1, 1], [], []>} : vector<8x128xf32>, vector<128x128xf32>, vector<8x128xf32> -> vector<8x128xf32>
    %c0_15 = arith.constant 0 : index
    %c0_16 = arith.constant 0 : index
    %17 = vector.load %arg7[%c0_15, %c0_16] : memref<1x128xf32, #tpu.memory_space<vmem>>, vector<1x128xf32>
    %18 = vector.broadcast %17 : vector<1x128xf32> to vector<8x128xf32>
    %19 = arith.addf %16, %18 : vector<8x128xf32>
    %cst_17 = arith.constant 0.000000e+00 : f32
    %20 = vector.broadcast %cst_17 : f32 to vector<8x128xf32>
    %21 = arith.maximumf %19, %20 : vector<8x128xf32>
    %c0_18 = arith.constant 0 : index
    %c0_19 = arith.constant 0 : index
    %22 = vector.load %arg8[%c0_18, %c0_19] : memref<128x24xf32, #tpu.memory_space<vmem>>, vector<128x24xf32>
    %cst_20 = arith.constant dense<0.000000e+00> : vector<8x24xf32>
    %23 = tpu.matmul %21, %22, %cst_20 {dimension_numbers = #tpu.dot_dimension_numbers<[1], [0], [0], [1], [0, 0, 1, 1], [], []>} : vector<8x128xf32>, vector<128x24xf32>, vector<8x24xf32> -> vector<8x24xf32>
    %c0_21 = arith.constant 0 : index
    %c0_22 = arith.constant 0 : index
    %24 = vector.load %arg9[%c0_21, %c0_22] : memref<1x24xf32, #tpu.memory_space<vmem>>, vector<1x24xf32>
    %25 = vector.broadcast %24 : vector<1x24xf32> to vector<8x24xf32>
    %26 = arith.addf %23, %25 : vector<8x24xf32>
    %c0_23 = arith.constant 0 : index
    %c0_24 = arith.constant 0 : index
    %27 = vector.load %arg10[%c0_23, %c0_24] : memref<8x24xf32, #tpu.memory_space<vmem>>, vector<8x24xf32>
    tpu.vector_store %arg10[%c0_23, %c0_24], %26 {strides = array<i32>} : memref<8x24xf32, #tpu.memory_space<vmem>>, vector<8x24xf32>,
    return
  }
  func.func @transform_0(%arg0: i32) -> (i32, i32) {
    %c0_i32 = arith.constant 0 : i32
    %c0_i32_0 = arith.constant 0 : i32
    return %arg0, %c0_i32 : i32, i32
  }
  func.func @transform_1(%arg0: i32) -> (i32, i32) {
    %c0_i32 = arith.constant 0 : i32
    %c0_i32_0 = arith.constant 0 : i32
    %c0_i32_1 = arith.constant 0 : i32
    return %c0_i32, %c0_i32_0 : i32, i32
  }
  func.func @transform_2(%arg0: i32) -> (i32, i32) {
    %c0_i32 = arith.constant 0 : i32
    %c0_i32_0 = arith.constant 0 : i32
    %c0_i32_1 = arith.constant 0 : i32
    return %c0_i32, %c0_i32_0 : i32, i32
  }
  func.func @transform_3(%arg0: i32) -> (i32, i32) {
    %c0_i32 = arith.constant 0 : i32
    %c0_i32_0 = arith.constant 0 : i32
    %c0_i32_1 = arith.constant 0 : i32
    return %c0_i32, %c0_i32_0 : i32, i32
  }
  func.func @transform_4(%arg0: i32) -> (i32, i32) {
    %c0_i32 = arith.constant 0 : i32
    %c0_i32_0 = arith.constant 0 : i32
    %c0_i32_1 = arith.constant 0 : i32
    return %c0_i32, %c0_i32_0 : i32, i32
  }
  func.func @transform_5(%arg0: i32) -> (i32, i32) {
    %c0_i32 = arith.constant 0 : i32
    %c0_i32_0 = arith.constant 0 : i32
    %c0_i32_1 = arith.constant 0 : i32
    return %c0_i32, %c0_i32_0 : i32, i32
  }
  func.func @transform_6(%arg0: i32) -> (i32, i32) {
    %c0_i32 = arith.constant 0 : i32
    %c0_i32_0 = arith.constant 0 : i32
    %c0_i32_1 = arith.constant 0 : i32
    return %c0_i32, %c0_i32_0 : i32, i32
  }
  func.func @transform_7(%arg0: i32) -> (i32, i32) {
    %c0_i32 = arith.constant 0 : i32
    %c0_i32_0 = arith.constant 0 : i32
    %c0_i32_1 = arith.constant 0 : i32
    return %c0_i32, %c0_i32_0 : i32, i32
  }
  func.func @transform_8(%arg0: i32) -> (i32, i32) {
    %c0_i32 = arith.constant 0 : i32
    %c0_i32_0 = arith.constant 0 : i32
    %c0_i32_1 = arith.constant 0 : i32
    return %c0_i32, %c0_i32_0 : i32, i32
  }
  func.func @transform_9(%arg0: i32) -> (i32, i32) {
    %c0_i32 = arith.constant 0 : i32
    %c0_i32_0 = arith.constant 0 : i32
    return %arg0, %c0_i32 : i32, i32
  }
}

</mosaic_0001>

<llo_original>
// kernel: tpu_custom_call.1
$region0: #{tpu_custom_call.1}
  #allocation0 [shape = 'u32[]', space=smem, size = 0x4, offset = 0x4, fixed_abs, tag = 'smem constant byte address 0x4 - core index']
  #allocation1 [shape = 'u32[144,128]{1,0:T(1,128)}', space=vmem, size = 0x12000, scoped, tag = 'internal scratch']
  %s0 = inlined_call_operand.hbm [shape: f32[8,24], index: 0, kind: input, shape index: {}]
  %s1 = inlined_call_operand.vmem [shape: f32[24,128], index: 1, kind: input, shape index: {}]
  %s2 = inlined_call_operand.vmem [shape: f32[1,128], index: 2, kind: input, shape index: {}]
  %s3 = inlined_call_operand.vmem [shape: f32[128,128], index: 3, kind: input, shape index: {}]
  %s4 = inlined_call_operand.vmem [shape: f32[1,128], index: 4, kind: input, shape index: {}]
  %s5 = inlined_call_operand.hbm [shape: f32[128,128], index: 5, kind: input, shape index: {}]
  %s6 = inlined_call_operand.hbm [shape: f32[1,128], index: 6, kind: input, shape index: {}]
  %s7 = inlined_call_operand.vmem [shape: f32[128,24], index: 7, kind: input, shape index: {}]
  %s8 = inlined_call_operand.vmem [shape: f32[1,24], index: 8, kind: input, shape index: {}]
  %s9 = inlined_call_operand.hbm [shape: f32[8,24], index: 9, kind: output, shape index: {}]
  %s10 = sld [smem:[#allocation0]]
  $region58: #{tpu_custom_call.1} parent=0
    _
  %s12 = ssub.s32 1, %s10
  %s13 = scalar_select 0, %s12, %s10
  $region1: #{tpu_custom_call.1} parent=0
    #allocation2 [shape = 'u8[4096]{0}', space=vmem, size = 0x1000, scoped, tag = 'input window, operand 0, single buffered']
    #allocation3 [shape = 's32[1]{0}', space=sflag, size = 0x4, scoped, tag = 'scoped memory for tpu_custom_call.1']
    #allocation4 [shape = 's32[1]{0}', space=sflag, size = 0x4, scoped, tag = 'scoped memory for tpu_custom_call.1']
    #allocation5 [shape = 'u8[65536]{0}', space=vmem, size = 0x10000, scoped, tag = 'input window, operand 5, single buffered']
    #allocation6 [shape = 's32[1]{0}', space=sflag, size = 0x4, scoped, tag = 'scoped memory for tpu_custom_call.1']
    #allocation7 [shape = 'u8[512]{0}', space=vmem, size = 0x400, scoped, tag = 'input window, operand 6, single buffered']
    #allocation8 [shape = 'u8[4096]{0}', space=vmem, size = 0x1000, scoped, tag = 'output window, operand 0, single buffered']
    %14 = vsyncpa [#allocation3], 0
    %15 = vsyncpa [#allocation6], 0
    %16 = vsyncpa [#allocation4], 0
    // Predicated region
    $region2: #{tpu_custom_call.1} parent=1 // pred_check
      _
    $region3: #{tpu_custom_call.1} parent=1 // pred_check_branch
      %18 = sbr.rel (0) target = $region5
    $region4: #{tpu_custom_call.1} parent=1 // pred_region
      %s20 = ssub.s32 128, 128
      %21 = vsyncadd [#allocation3], %s20
      %s23 = sshll.u32 [#allocation2], 4
      %s24 = int_to_ptr.vmem [resolvable:$true] %s23
      %26 = dma.hbm_to_vmem [thread:$0]  %s0, 128, %s24, [#allocation3]
    $region5: #{tpu_custom_call.1} parent=1 // pred_fallthru
      _
    // Predicated region
    $region6: #{tpu_custom_call.1} parent=1 // pred_check
      _
    $region7: #{tpu_custom_call.1} parent=1 // pred_check_branch
      %28 = sbr.rel (0) target = $region9
    $region8: #{tpu_custom_call.1} parent=1 // pred_region
      _
    $region9: #{tpu_custom_call.1} parent=1 // pred_fallthru
      _
    // Predicated region
    $region10: #{tpu_custom_call.1} parent=1 // pred_check
      _
    $region11: #{tpu_custom_call.1} parent=1 // pred_check_branch
      %30 = sbr.rel (0) target = $region13
    $region12: #{tpu_custom_call.1} parent=1 // pred_region
      _
    $region13: #{tpu_custom_call.1} parent=1 // pred_fallthru
      _
    // Predicated region
    $region14: #{tpu_custom_call.1} parent=1 // pred_check
      _
    $region15: #{tpu_custom_call.1} parent=1 // pred_check_branch
      %32 = sbr.rel (0) target = $region17
    $region16: #{tpu_custom_call.1} parent=1 // pred_region
      _
    $region17: #{tpu_custom_call.1} parent=1 // pred_fallthru
      _
    // Predicated region
    $region18: #{tpu_custom_call.1} parent=1 // pred_check
      _
    $region19: #{tpu_custom_call.1} parent=1 // pred_check_branch
      %34 = sbr.rel (0) target = $region21
    $region20: #{tpu_custom_call.1} parent=1 // pred_region
      _
    $region21: #{tpu_custom_call.1} parent=1 // pred_fallthru
      _
    // Predicated region
    $region22: #{tpu_custom_call.1} parent=1 // pred_check
      _
    $region23: #{tpu_custom_call.1} parent=1 // pred_check_branch
      %36 = sbr.rel (0) target = $region25
    $region24: #{tpu_custom_call.1} parent=1 // pred_region
      %s38 = ssub.s32 2048, 2048
      %39 = vsyncadd [#allocation6], %s38
      %s40 = sshll.u32 [#allocation5], 4
      %s41 = int_to_ptr.vmem [resolvable:$true] %s40
      %46 = dma.hbm_to_vmem [thread:$0]  %s5, 2048, %s41, [#allocation6], 128, 128, 8
    $region25: #{tpu_custom_call.1} parent=1 // pred_fallthru
      _
    // Predicated region
    $region26: #{tpu_custom_call.1} parent=1 // pred_check
      _
    $region27: #{tpu_custom_call.1} parent=1 // pred_check_branch
      %48 = sbr.rel (0) target = $region29
    $region28: #{tpu_custom_call.1} parent=1 // pred_region
      %s50 = ssub.s32 16, 16
      %51 = vsyncadd [#allocation6], %s50
      %s53 = sshll.u32 [#allocation7], 4
      %s54 = int_to_ptr.vmem [resolvable:$true] %s53
      %56 = dma.hbm_to_vmem [thread:$0]  %s6, 16, %s54, [#allocation6]
    $region29: #{tpu_custom_call.1} parent=1 // pred_fallthru
      _
    // Predicated region
    $region30: #{tpu_custom_call.1} parent=1 // pred_check
      _
    $region31: #{tpu_custom_call.1} parent=1 // pred_check_branch
      %58 = sbr.rel (0) target = $region33
    $region32: #{tpu_custom_call.1} parent=1 // pred_region
      _
    $region33: #{tpu_custom_call.1} parent=1 // pred_fallthru
      _
    // Predicated region
    $region34: #{tpu_custom_call.1} parent=1 // pred_check
      _
    $region35: #{tpu_custom_call.1} parent=1 // pred_check_branch
      %60 = sbr.rel (0) target = $region37
    $region36: #{tpu_custom_call.1} parent=1 // pred_region
      _
    $region37: #{tpu_custom_call.1} parent=1 // pred_fallthru
      _
    // Predicated region
    $region38: #{tpu_custom_call.1} parent=1 // pred_check
      _
    $region39: #{tpu_custom_call.1} parent=1 // pred_check_branch
      %62 = sbr.rel (0) target = $region41
    $region40: #{tpu_custom_call.1} parent=1 // pred_region
      %63 = dma.done [#allocation3], 128
    $region41: #{tpu_custom_call.1} parent=1 // pred_fallthru
      _
    // Predicated region
    $region42: #{tpu_custom_call.1} parent=1 // pred_check
      _
    $region43: #{tpu_custom_call.1} parent=1 // pred_check_branch
      %65 = sbr.rel (0) target = $region45
    $region44: #{tpu_custom_call.1} parent=1 // pred_region
      %66 = dma.done [#allocation6], 2048
    $region45: #{tpu_custom_call.1} parent=1 // pred_fallthru
      _
    // Predicated region
    $region46: #{tpu_custom_call.1} parent=1 // pred_check
      _
    $region47: #{tpu_custom_call.1} parent=1 // pred_check_branch
      %68 = sbr.rel (0) target = $region49
    $region48: #{tpu_custom_call.1} parent=1 // pred_region
      %69 = dma.done [#allocation6], 16
    $region49: #{tpu_custom_call.1} parent=1 // pred_fallthru
      _
    %v70 = vld [vmem:[#allocation2] sm:$0xff]
    %v71 = vld [vmem:[%s1] sm:$0xff]
    %v72 = vld [vmem:[%s1 + $0x8] sm:$0xff]
    %v73 = vld [vmem:[%s1 + $0x10] sm:$0xff]
    %v74 = vld [vmem:[%s2] sm:$0x1]
    %v76 = vlaneseq
    %v77 = vshrl.u32 %v76, 7
    %v78 = vsub.s32 0, %v77
    %v79 = vrot.slane %v74, %v78
    %vm81 = vcmask 195584
    %v83 = vsel %vm81, %v70, 0
    %85 = vmatprep.subr.mxu0 0.0
    %86 = vmatpush1.msra.mxu0 %v71
    %87 = vmatprep.subr.mxu0 0.0
    %88 = vmatpush1.msra.mxu0 %v72
    %89 = vmatprep.subr.mxu0 0.0
    %90 = vmatpush1.msra.mxu0 %v73
    %91 = vmatprep.subr.mxu0 0.0
    %92 = vmatpush1.msra.mxu0 0.0
    %93 = vmatprep.subr.mxu0 0.0
    %94 = vmatpush1.msra.mxu0 0.0
    %95 = vmatprep.subr.mxu0 0.0
    %96 = vmatpush1.msra.mxu0 0.0
    %97 = vmatprep.subr.mxu0 0.0
    %98 = vmatpush1.msra.mxu0 0.0
    %99 = vmatprep.subr.mxu0 0.0
    %100 = vmatpush1.msra.mxu0 0.0
    %101 = vmatprep.subr.mxu0 0.0
    %102 = vmatpush1.msra.mxu0 0.0
    %103 = vmatprep.subr.mxu0 0.0
    %104 = vmatpush1.msra.mxu0 0.0
    %105 = vmatprep.subr.mxu0 0.0
    %106 = vmatpush1.msra.mxu0 0.0
    %107 = vmatprep.subr.mxu0 0.0
    %108 = vmatpush1.msra.mxu0 0.0
    %109 = vmatprep.subr.mxu0 0.0
    %110 = vmatpush1.msra.mxu0 0.0
    %111 = vmatprep.subr.mxu0 0.0
    %112 = vmatpush1.msra.mxu0 0.0
    %113 = vmatprep.subr.mxu0 0.0
    %114 = vmatpush1.msra.mxu0 0.0
    %115 = vmatprep.subr.mxu0 0.0
    %116 = vmatpush1.msra.mxu0 0.0
    %117 = vmatprep.subr.mxu0 0.0
    %118 = vmatpush1.msra.mxu0 0.0
    %119 = vmatprep.subr.mxu0 0.0
    %120 = vmatpush1.msra.mxu0 0.0
    %121 = vmatprep.subr.mxu0 0.0
    %122 = vmatpush1.msra.mxu0 0.0
    %123 = vmatprep.subr.mxu0 0.0
    %124 = vmatpush1.msra.mxu0 0.0
    %125 = vmatprep.subr.mxu0 0.0
    %126 = vmatpush1.msra.mxu0 0.0
    %127 = vmatprep.subr.mxu0 0.0
    %128 = vmatpush1.msra.mxu0 0.0
    %129 = vmatprep.subr.mxu0 0.0
    %130 = vmatpush1.msra.mxu0 0.0
    %131 = vmatprep.subr.mxu0 0.0
    %132 = vmatpush1.msra.mxu0 0.0
    %133 = vmatprep.subr.mxu0 0.0
    %134 = vmatpush1.msra.mxu0 0.0
    %135 = vmatprep.subr.mxu0 0.0
    %136 = vmatpush1.msra.mxu0 0.0
    %137 = vmatprep.subr.mxu0 0.0
    %138 = vmatpush1.msra.mxu0 0.0
    %139 = vmatprep.subr.mxu0 0.0
    %140 = vmatpush1.msra.mxu0 0.0
    %141 = vmatprep.subr.mxu0 0.0
    %142 = vmatpush1.msra.mxu0 0.0
    %143 = vmatprep.subr.mxu0 0.0
    %144 = vmatpush1.msra.mxu0 0.0
    %145 = vmatprep.subr.mxu0 0.0
    %146 = vmatpush1.msra.mxu0 0.0
    %147 = vmatprep.subr.mxu0 0.0
    %148 = vmatpush1.msra.mxu0 0.0
    %149 = vmatprep.mubr.f32.mxu0 0.0
    %150 = vmatmul.mubr.f32.gmra.mrb[0].mxu0 %v83
    %v151 = vpop.f32.mrb[0].mxu0
    %v152 = vadd.f32 %v79, %v151
    %v153 = vpop.f32.mrb[0].mxu0
    %154 = vdwg.mxu0
    %v155 = vmax.f32 %v152, 0.0
    %v156 = vld [vmem:[%s3] sm:$0xff]
    %v157 = vld [vmem:[%s3 + $0x8] sm:$0xff]
    %v158 = vld [vmem:[%s3 + $0x10] sm:$0xff]
    %v159 = vld [vmem:[%s3 + $0x18] sm:$0xff]
    %v160 = vld [vmem:[%s3 + $0x20] sm:$0xff]
    %v161 = vld [vmem:[%s3 + $0x28] sm:$0xff]
    %v162 = vld [vmem:[%s3 + $0x30] sm:$0xff]
    %v163 = vld [vmem:[%s3 + $0x38] sm:$0xff]
    %v164 = vld [vmem:[%s3 + $0x40] sm:$0xff]
    %v165 = vld [vmem:[%s3 + $0x48] sm:$0xff]
    %v166 = vld [vmem:[%s3 + $0x50] sm:$0xff]
    %v167 = vld [vmem:[%s3 + $0x58] sm:$0xff]
    %v168 = vld [vmem:[%s3 + $0x60] sm:$0xff]
    %v169 = vld [vmem:[%s3 + $0x68] sm:$0xff]
    %v170 = vld [vmem:[%s3 + $0x70] sm:$0xff]
    %v171 = vld [vmem:[%s3 + $0x78] sm:$0xff]
    %v172 = vld [vmem:[%s4] sm:$0x1]
    %v174 = vlaneseq
    %v175 = vshrl.u32 %v174, 7
    %v176 = vsub.s32 0, %v175
    %v177 = vrot.slane %v172, %v176
    %179 = vmatprep.subr.mxu0 0.0
    %180 = vmatpush1.msra.mxu0 %v156
    %181 = vmatprep.subr.mxu0 0.0
    %182 = vmatpush1.msra.mxu0 %v157
    %183 = vmatprep.subr.mxu0 0.0
    %184 = vmatpush1.msra.mxu0 %v158
    %185 = vmatprep.subr.mxu0 0.0
    %186 = vmatpush1.msra.mxu0 %v159
    %187 = vmatprep.subr.mxu0 0.0
    %188 = vmatpush1.msra.mxu0 %v160
    %189 = vmatprep.subr.mxu0 0.0
    %190 = vmatpush1.msra.mxu0 %v161
    %191 = vmatprep.subr.mxu0 0.0
    %192 = vmatpush1.msra.mxu0 %v162
    %193 = vmatprep.subr.mxu0 0.0
    %194 = vmatpush1.msra.mxu0 %v163
    %195 = vmatprep.subr.mxu0 0.0
    %196 = vmatpush1.msra.mxu0 %v164
    %197 = vmatprep.subr.mxu0 0.0
    %198 = vmatpush1.msra.mxu0 %v165
    %199 = vmatprep.subr.mxu0 0.0
    %200 = vmatpush1.msra.mxu0 %v166
    %201 = vmatprep.subr.mxu0 0.0
    %202 = vmatpush1.msra.mxu0 %v167
    %203 = vmatprep.subr.mxu0 0.0
    %204 = vmatpush1.msra.mxu0 %v168
    %205 = vmatprep.subr.mxu0 0.0
    %206 = vmatpush1.msra.mxu0 %v169
    %207 = vmatprep.subr.mxu0 0.0
    %208 = vmatpush1.msra.mxu0 %v170
    %209 = vmatprep.subr.mxu0 0.0
    %210 = vmatpush1.msra.mxu0 %v171
    %211 = vmatprep.subr.mxu0 0.0
    %212 = vmatpush1.msra.mxu0 0.0
    %213 = vmatprep.subr.mxu0 0.0
    %214 = vmatpush1.msra.mxu0 0.0
    %215 = vmatprep.subr.mxu0 0.0
    %216 = vmatpush1.msra.mxu0 0.0
    %217 = vmatprep.subr.mxu0 0.0
    %218 = vmatpush1.msra.mxu0 0.0
    %219 = vmatprep.subr.mxu0 0.0
    %220 = vmatpush1.msra.mxu0 0.0
    %221 = vmatprep.subr.mxu0 0.0
    %222 = vmatpush1.msra.mxu0 0.0
    %223 = vmatprep.subr.mxu0 0.0
    %224 = vmatpush1.msra.mxu0 0.0
    %225 = vmatprep.subr.mxu0 0.0
    %226 = vmatpush1.msra.mxu0 0.0
    %227 = vmatprep.subr.mxu0 0.0
    %228 = vmatpush1.msra.mxu0 0.0
    %229 = vmatprep.subr.mxu0 0.0
    %230 = vmatpush1.msra.mxu0 0.0
    %231 = vmatprep.subr.mxu0 0.0
    %232 = vmatpush1.msra.mxu0 0.0
    %233 = vmatprep.subr.mxu0 0.0
    %234 = vmatpush1.msra.mxu0 0.0
    %235 = vmatprep.subr.mxu0 0.0
    %236 = vmatpush1.msra.mxu0 0.0
    %237 = vmatprep.subr.mxu0 0.0
    %238 = vmatpush1.msra.mxu0 0.0
    %239 = vmatprep.subr.mxu0 0.0
    %240 = vmatpush1.msra.mxu0 0.0
    %241 = vmatprep.subr.mxu0 0.0
    %242 = vmatpush1.msra.mxu0 0.0
    %243 = vmatprep.mubr.f32.mxu0 0.0
    %244 = vmatmul.mubr.f32.gmra.mrb[0].mxu0 %v155
    %v245 = vpop.f32.mrb[0].mxu0
    %v246 = vadd.f32 %v177, %v245
    %v247 = vpop.f32.mrb[0].mxu0
    %248 = vdwg.mxu0
    %v249 = vmax.f32 %v246, 0.0
    %v250 = vld [vmem:[#allocation5] sm:$0xff]
    %v251 = vld [vmem:[#allocation5 + $0x8] sm:$0xff]
    %v252 = vld [vmem:[#allocation5 + $0x10] sm:$0xff]
    %v253 = vld [vmem:[#allocation5 + $0x18] sm:$0xff]
    %v254 = vld [vmem:[#allocation5 + $0x20] sm:$0xff]
    %v255 = vld [vmem:[#allocation5 + $0x28] sm:$0xff]
    %v256 = vld [vmem:[#allocation5 + $0x30] sm:$0xff]
    %v257 = vld [vmem:[#allocation5 + $0x38] sm:$0xff]
    %v258 = vld [vmem:[#allocation5 + $0x40] sm:$0xff]
    %v259 = vld [vmem:[#allocation5 + $0x48] sm:$0xff]
    %v260 = vld [vmem:[#allocation5 + $0x50] sm:$0xff]
    %v261 = vld [vmem:[#allocation5 + $0x58] sm:$0xff]
    %v262 = vld [vmem:[#allocation5 + $0x60] sm:$0xff]
    %v263 = vld [vmem:[#allocation5 + $0x68] sm:$0xff]
    %v264 = vld [vmem:[#allocation5 + $0x70] sm:$0xff]
    %v265 = vld [vmem:[#allocation5 + $0x78] sm:$0xff]
    %v266 = vld [vmem:[#allocation7] sm:$0x1]
    %v268 = vlaneseq
    %v269 = vshrl.u32 %v268, 7
    %v270 = vsub.s32 0, %v269
    %v271 = vrot.slane %v266, %v270
    %273 = vmatprep.subr.mxu0 0.0
    %274 = vmatpush1.msra.mxu0 %v250
    %275 = vmatprep.subr.mxu0 0.0
    %276 = vmatpush1.msra.mxu0 %v251
    %277 = vmatprep.subr.mxu0 0.0
    %278 = vmatpush1.msra.mxu0 %v252
    %279 = vmatprep.subr.mxu0 0.0
    %280 = vmatpush1.msra.mxu0 %v253
    %281 = vmatprep.subr.mxu0 0.0
    %282 = vmatpush1.msra.mxu0 %v254
    %283 = vmatprep.subr.mxu0 0.0
    %284 = vmatpush1.msra.mxu0 %v255
    %285 = vmatprep.subr.mxu0 0.0
    %286 = vmatpush1.msra.mxu0 %v256
    %287 = vmatprep.subr.mxu0 0.0
    %288 = vmatpush1.msra.mxu0 %v257
    %289 = vmatprep.subr.mxu0 0.0
    %290 = vmatpush1.msra.mxu0 %v258
    %291 = vmatprep.subr.mxu0 0.0
    %292 = vmatpush1.msra.mxu0 %v259
    %293 = vmatprep.subr.mxu0 0.0
    %294 = vmatpush1.msra.mxu0 %v260
    %295 = vmatprep.subr.mxu0 0.0
    %296 = vmatpush1.msra.mxu0 %v261
    %297 = vmatprep.subr.mxu0 0.0
    %298 = vmatpush1.msra.mxu0 %v262
    %299 = vmatprep.subr.mxu0 0.0
    %300 = vmatpush1.msra.mxu0 %v263
    %301 = vmatprep.subr.mxu0 0.0
    %302 = vmatpush1.msra.mxu0 %v264
    %303 = vmatprep.subr.mxu0 0.0
    %304 = vmatpush1.msra.mxu0 %v265
    %305 = vmatprep.subr.mxu0 0.0
    %306 = vmatpush1.msra.mxu0 0.0
    %307 = vmatprep.subr.mxu0 0.0
    %308 = vmatpush1.msra.mxu0 0.0
    %309 = vmatprep.subr.mxu0 0.0
    %310 = vmatpush1.msra.mxu0 0.0
    %311 = vmatprep.subr.mxu0 0.0
    %312 = vmatpush1.msra.mxu0 0.0
    %313 = vmatprep.subr.mxu0 0.0
    %314 = vmatpush1.msra.mxu0 0.0
    %315 = vmatprep.subr.mxu0 0.0
    %316 = vmatpush1.msra.mxu0 0.0
    %317 = vmatprep.subr.mxu0 0.0
    %318 = vmatpush1.msra.mxu0 0.0
    %319 = vmatprep.subr.mxu0 0.0
    %320 = vmatpush1.msra.mxu0 0.0
    %321 = vmatprep.subr.mxu0 0.0
    %322 = vmatpush1.msra.mxu0 0.0
    %323 = vmatprep.subr.mxu0 0.0
    %324 = vmatpush1.msra.mxu0 0.0
    %325 = vmatprep.subr.mxu0 0.0
    %326 = vmatpush1.msra.mxu0 0.0
    %327 = vmatprep.subr.mxu0 0.0
    %328 = vmatpush1.msra.mxu0 0.0
    %329 = vmatprep.subr.mxu0 0.0
    %330 = vmatpush1.msra.mxu0 0.0
    %331 = vmatprep.subr.mxu0 0.0
    %332 = vmatpush1.msra.mxu0 0.0
    %333 = vmatprep.subr.mxu0 0.0
    %334 = vmatpush1.msra.mxu0 0.0
    %335 = vmatprep.subr.mxu0 0.0
    %336 = vmatpush1.msra.mxu0 0.0
    %337 = vmatprep.mubr.f32.mxu0 0.0
    %338 = vmatmul.mubr.f32.gmra.mrb[0].mxu0 %v249
    %v339 = vpop.f32.mrb[0].mxu0
    %v340 = vadd.f32 %v271, %v339
    %v341 = vpop.f32.mrb[0].mxu0
    %342 = vdwg.mxu0
    %v343 = vmax.f32 %v340, 0.0
    %v344 = vld [vmem:[%s7] sm:$0xff]
    %v345 = vld [vmem:[%s7 + $0x8] sm:$0xff]
    %v346 = vld [vmem:[%s7 + $0x10] sm:$0xff]
    %v347 = vld [vmem:[%s7 + $0x18] sm:$0xff]
    %v348 = vld [vmem:[%s7 + $0x20] sm:$0xff]
    %v349 = vld [vmem:[%s7 + $0x28] sm:$0xff]
    %v350 = vld [vmem:[%s7 + $0x30] sm:$0xff]
    %v351 = vld [vmem:[%s7 + $0x38] sm:$0xff]
    %v352 = vld [vmem:[%s7 + $0x40] sm:$0xff]
    %v353 = vld [vmem:[%s7 + $0x48] sm:$0xff]
    %v354 = vld [vmem:[%s7 + $0x50] sm:$0xff]
    %v355 = vld [vmem:[%s7 + $0x58] sm:$0xff]
    %v356 = vld [vmem:[%s7 + $0x60] sm:$0xff]
    %v357 = vld [vmem:[%s7 + $0x68] sm:$0xff]
    %v358 = vld [vmem:[%s7 + $0x70] sm:$0xff]
    %v359 = vld [vmem:[%s7 + $0x78] sm:$0xff]
    %v360 = vld [vmem:[%s8] sm:$0x1]
    %v362 = vlaneseq
    %v363 = vshrl.u32 %v362, 7
    %v364 = vsub.s32 0, %v363
    %v365 = vrot.slane %v360, %v364
    %367 = vmatprep.subr.mxu0 0.0
    %368 = vmatpush1.msra.mxu0 %v344
    %369 = vmatprep.subr.mxu0 0.0
    %370 = vmatpush1.msra.mxu0 %v345
    %371 = vmatprep.subr.mxu0 0.0
    %372 = vmatpush1.msra.mxu0 %v346
    %373 = vmatprep.subr.mxu0 0.0
    %374 = vmatpush1.msra.mxu0 %v347
    %375 = vmatprep.subr.mxu0 0.0
    %376 = vmatpush1.msra.mxu0 %v348
    %377 = vmatprep.subr.mxu0 0.0
    %378 = vmatpush1.msra.mxu0 %v349
    %379 = vmatprep.subr.mxu0 0.0
    %380 = vmatpush1.msra.mxu0 %v350
    %381 = vmatprep.subr.mxu0 0.0
    %382 = vmatpush1.msra.mxu0 %v351
    %383 = vmatprep.subr.mxu0 0.0
    %384 = vmatpush1.msra.mxu0 %v352
    %385 = vmatprep.subr.mxu0 0.0
    %386 = vmatpush1.msra.mxu0 %v353
    %387 = vmatprep.subr.mxu0 0.0
    %388 = vmatpush1.msra.mxu0 %v354
    %389 = vmatprep.subr.mxu0 0.0
    %390 = vmatpush1.msra.mxu0 %v355
    %391 = vmatprep.subr.mxu0 0.0
    %392 = vmatpush1.msra.mxu0 %v356
    %393 = vmatprep.subr.mxu0 0.0
    %394 = vmatpush1.msra.mxu0 %v357
    %395 = vmatprep.subr.mxu0 0.0
    %396 = vmatpush1.msra.mxu0 %v358
    %397 = vmatprep.subr.mxu0 0.0
    %398 = vmatpush1.msra.mxu0 %v359
    %399 = vmatprep.subr.mxu0 0.0
    %400 = vmatpush1.msra.mxu0 0.0
    %401 = vmatprep.subr.mxu0 0.0
    %402 = vmatpush1.msra.mxu0 0.0
    %403 = vmatprep.subr.mxu0 0.0
    %404 = vmatpush1.msra.mxu0 0.0
    %405 = vmatprep.subr.mxu0 0.0
    %406 = vmatpush1.msra.mxu0 0.0
    %407 = vmatprep.subr.mxu0 0.0
    %408 = vmatpush1.msra.mxu0 0.0
    %409 = vmatprep.subr.mxu0 0.0
    %410 = vmatpush1.msra.mxu0 0.0
    %411 = vmatprep.subr.mxu0 0.0
    %412 = vmatpush1.msra.mxu0 0.0
    %413 = vmatprep.subr.mxu0 0.0
    %414 = vmatpush1.msra.mxu0 0.0
    %415 = vmatprep.subr.mxu0 0.0
    %416 = vmatpush1.msra.mxu0 0.0
    %417 = vmatprep.subr.mxu0 0.0
    %418 = vmatpush1.msra.mxu0 0.0
    %419 = vmatprep.subr.mxu0 0.0
    %420 = vmatpush1.msra.mxu0 0.0
    %421 = vmatprep.subr.mxu0 0.0
    %422 = vmatpush1.msra.mxu0 0.0
    %423 = vmatprep.subr.mxu0 0.0
    %424 = vmatpush1.msra.mxu0 0.0
    %425 = vmatprep.subr.mxu0 0.0
    %426 = vmatpush1.msra.mxu0 0.0
    %427 = vmatprep.subr.mxu0 0.0
    %428 = vmatpush1.msra.mxu0 0.0
    %429 = vmatprep.subr.mxu0 0.0
    %430 = vmatpush1.msra.mxu0 0.0
    %431 = vmatprep.mubr.f32.mxu0 0.0
    %432 = vmatmul.mubr.f32.gmra.mrb[0].mxu0 %v343
    %v433 = vpop.f32.mrb[0].mxu0
    %v434 = vadd.f32 %v365, %v433
    %v435 = vpop.f32.mrb[0].mxu0
    %436 = vdwg.mxu0
    %437 = vst.msk [vmem:[#allocation8] sm:$0xff] %vm81, %v434
    // Predicated region
    $region50: #{tpu_custom_call.1} parent=1 // pred_check
      _
    $region51: #{tpu_custom_call.1} parent=1 // pred_check_branch
      %439 = sbr.rel (0) target = $region53
    $region52: #{tpu_custom_call.1} parent=1 // pred_region
      %s441 = ssub.s32 128, 128
      %442 = vsyncadd [#allocation4], %s441
      %s444 = sshll.u32 [#allocation8], 4
      %s445 = int_to_ptr.vmem [resolvable:$true] %s444
      %447 = dma.vmem_to_hbm [thread:$0]  %s445, 128, %s9, [#allocation4]
    $region53: #{tpu_custom_call.1} parent=1 // pred_fallthru
      _
    // Predicated region
    $region54: #{tpu_custom_call.1} parent=1 // pred_check
      _
    $region55: #{tpu_custom_call.1} parent=1 // pred_check_branch
      %449 = sbr.rel (0) target = $region57
    $region56: #{tpu_custom_call.1} parent=1 // pred_region
      %450 = dma.done [#allocation4], 128
    $region57: #{tpu_custom_call.1} parent=1 // pred_fallthru
      _
    %451 = vsyncpa [#allocation3], 1
    %452 = vsyncpa [#allocation6], 1
    %453 = vsyncpa [#allocation4], 1

</llo_original>
